<compile_context>
chip_gen: v5e
topology: v5e:2x2
jax: 0.10.0
libtpu: 0.0.40
codegen_flags: <defaults>
</compile_context>

<pallas_src>
import functools
import numpy as np

import jax
import jax.numpy as jnp
from jax import lax
from jax.experimental import pallas as pl
from jax.experimental.pallas import tpu as pltpu

EPS_LN = 1e-5  # torch.nn.LayerNorm default eps


# ----------------------------------------------------------------------------
# helpers
# ----------------------------------------------------------------------------
def _row_tile(m, max_tile=256):
    """Fixed row tile (multiple of 8) with a cdiv grid; whole array if small."""
    return m if m <= max_tile else max_tile


def _pick_graphs_per_block(B, N):
    """Graphs per encoder grid step: fill >=128 matmul rows, keep the block legal."""
    bb = min(B, max(1, -(-128 // N)))          # ceil(128 / N), capped at B
    while bb > 1 and (B % bb != 0 or (bb * N) % 8 != 0):
        bb -= 1
    if bb < B and (bb * N) % 8 != 0:
        bb = B                                 # full-array block is always legal
    return bb


def _ln(x, g, b):
    mu = jnp.mean(x, axis=-1, keepdims=True)
    var = jnp.mean((x - mu) ** 2, axis=-1, keepdims=True)
    return (x - mu) * lax.rsqrt(var + EPS_LN) * g + b


def _gelu(x):
    # TODO(synk): nn.GELU() default is exact (erf-based); tanh approximation used for robust Mosaic lowering.
    c = 0.7978845608028654  # sqrt(2/pi)
    return 0.5 * x * (1.0 + jnp.tanh(c * (x + 0.044715 * x * x * x)))


# ----------------------------------------------------------------------------
# Pallas kernel: y = x @ W_T (+ b)   (M tiled on a parallel cdiv grid)
# ----------------------------------------------------------------------------
def _linear_bias_kernel(x_ref, wt_ref, b_ref, o_ref):
    w = wt_ref[...]
    o_ref[...] = (jnp.dot(x_ref[...].astype(w.dtype), w,
                          preferred_element_type=jnp.float32) + b_ref[...])


def _linear_nobias_kernel(x_ref, wt_ref, o_ref):
    w = wt_ref[...]
    o_ref[...] = jnp.dot(x_ref[...].astype(w.dtype), w,
                         preferred_element_type=jnp.float32)


def pallas_linear(x, wt, b=None):
    """x: (M, K) f32; wt: (K, Nout) pre-transposed bf16; b: (1, Nout) f32 or None."""
    M, K = x.shape
    n_out = wt.shape[1]
    tm = _row_tile(M)
    in_specs = [pl.BlockSpec((tm, K), lambda i: (i, 0)),
                pl.BlockSpec((K, n_out), lambda i: (0, 0))]
    args = [x, wt]
    if b is not None:
        in_specs.append(pl.BlockSpec((1, n_out), lambda i: (0, 0)))
        args.append(b.astype(jnp.float32).reshape(1, n_out))
        kernel = _linear_bias_kernel
    else:
        kernel = _linear_nobias_kernel
    return pl.pallas_call(
        kernel,
        out_shape=jax.ShapeDtypeStruct((M, n_out), jnp.float32),
        grid=(pl.cdiv(M, tm),),
        in_specs=in_specs,
        out_specs=pl.BlockSpec((tm, n_out), lambda i: (i, 0)),
        compiler_params=pltpu.CompilerParams(dimension_semantics=("parallel",)),
    )(*args)


# ----------------------------------------------------------------------------
# Pallas kernel: LayerNorm over last dim (fallback, only used when n_layers == 0)
# ----------------------------------------------------------------------------
def _layernorm_kernel(x_ref, g_ref, b_ref, o_ref):
    o_ref[...] = _ln(x_ref[...], g_ref[...], b_ref[...])


def pallas_layernorm(x, gamma, beta):
    x = x.astype(jnp.float32)
    M, D = x.shape
    tm = _row_tile(M)
    return pl.pallas_call(
        _layernorm_kernel,
        out_shape=jax.ShapeDtypeStruct((M, D), jnp.float32),
        grid=(pl.cdiv(M, tm),),
        in_specs=[pl.BlockSpec((tm, D), lambda i: (i, 0)),
                  pl.BlockSpec((1, D), lambda i: (0, 0)),
                  pl.BlockSpec((1, D), lambda i: (0, 0))],
        out_specs=pl.BlockSpec((tm, D), lambda i: (i, 0)),
        compiler_params=pltpu.CompilerParams(dimension_semantics=("parallel",)),
    )(x, gamma.reshape(1, D).astype(jnp.float32),
      beta.reshape(1, D).astype(jnp.float32))


# ----------------------------------------------------------------------------
# Pallas kernel: fused GCN epilogue
#   out = relu( LN( aggr + relu(x_lin + root) * (1/deg) ) ) + residual
# ----------------------------------------------------------------------------
def _gcn_post_kernel(aggr_ref, xlin_ref, root_ref, invdeg_ref, res_ref,
                     g_ref, b_ref, o_ref):
    self_term = jnp.maximum(xlin_ref[...] + root_ref[...], 0.0) * invdeg_ref[...]
    y = _ln(aggr_ref[...] + self_term, g_ref[...], b_ref[...])
    o_ref[...] = jnp.maximum(y, 0.0) + res_ref[...]


def pallas_gcn_post(aggr, x_lin, root, inv_deg, res, gamma, beta):
    M, D = aggr.shape
    tm = _row_tile(M)

    def row_spec():
        return pl.BlockSpec((tm, D), lambda i: (i, 0))

    return pl.pallas_call(
        _gcn_post_kernel,
        out_shape=jax.ShapeDtypeStruct((M, D), jnp.float32),
        grid=(pl.cdiv(M, tm),),
        in_specs=[row_spec(), row_spec(), row_spec(),
                  pl.BlockSpec((tm, 1), lambda i: (i, 0)),
                  row_spec(),
                  pl.BlockSpec((1, D), lambda i: (0, 0)),
                  pl.BlockSpec((1, D), lambda i: (0, 0))],
        out_specs=row_spec(),
        compiler_params=pltpu.CompilerParams(dimension_semantics=("parallel",)),
    )(aggr, x_lin, root, inv_deg, res,
      gamma.reshape(1, D).astype(jnp.float32), beta.reshape(1, D).astype(jnp.float32))


# ----------------------------------------------------------------------------
# Pallas kernel: fused transformer Encoder (MSA_BLOCK + FFN + LayerNorms)
# One grid step == Bb graphs.  Attention bias built in-kernel from bf16 pad/mcl.
# ----------------------------------------------------------------------------
def _encoder_kernel(x_ref, pad_ref, mcl_ref, wmcl_ref,
                    wq_ref, wkv_ref, wo_ref, bo_ref,
                    ln1g_ref, ln1b_ref,
                    w1_ref, b1_ref, w2_ref, b2_ref,
                    ln2g_ref, ln2b_ref, fing_ref, finb_ref,
                    o_ref, *, head_num, head_dim, infla_dim, n_graphs, n_nodes,
                    apply_final_ln):
    f32 = jnp.float32
    D = head_num * head_dim
    N = n_nodes

    x = x_ref[...]                              # (Bb*N, D) f32 residual stream
    xb = x.astype(jnp.bfloat16)

    # hoisted small parameters (load once; JAX does not CSE broadcasts)
    bo = bo_ref[...]
    g1, b1 = ln1g_ref[...], ln1b_ref[...]
    g2, b2 = ln2g_ref[...], ln2b_ref[...]
    bf1, bf2 = b1_ref[...], b2_ref[...]

    # ---- batched projections: M = Bb*N rows fill the MXU; softmax scale folded in wq ----
    q = jnp.dot(xb, wq_ref[...], preferred_element_type=f32)         # (M, D)
    kv = jnp.dot(xb, wkv_ref[...], preferred_element_type=f32)       # (M, 2D) fused K/V
    k = kv[:, :D]
    v = kv[:, D:]

    trans_b = (((1,), (1,)), ((), ()))          # contract last dim of both operands

    # ---- per-graph per-head scores, sublane-stacked -> one softmax ----
    s_parts = []
    for b in range(n_graphs):
        r0 = b * N
        qb = q[r0:r0 + N, :]
        kb = k[r0:r0 + N, :]
        pad_b = pad_ref[b].astype(f32)                                 # (N, N)
        mcl_b = [mcl_ref[b, i].astype(f32) for i in range(infla_dim)]  # hoisted out of head loop
        for h in range(head_num):
            lo = h * head_dim
            s_bh = lax.dot_general(qb[:, lo:lo + head_dim], kb[:, lo:lo + head_dim],
                                   trans_b, preferred_element_type=f32)   # (N, N)
            bias_bh = pad_b
            for i in range(infla_dim):
                # w_mcl lives in SMEM: cheap scalar read, broadcast-multiplied on the VPU.
                bias_bh = bias_bh + wmcl_ref[h, i] * mcl_b[i]
            s_parts.append(s_bh + bias_bh)
    s = jnp.concatenate(s_parts, axis=0)                               # (Bb*H*N, N)

    s = s - jnp.max(s, axis=-1, keepdims=True)
    p = jnp.exp(s)
    p = p * pl.reciprocal(jnp.sum(p, axis=-1, keepdims=True), approx=True)

    # ---- per-graph context; head merge collapsed into ONE K=D matmul for the block ----
    ctx_parts = []
    for b in range(n_graphs):
        r0 = b * N
        vb = v[r0:r0 + N, :]
        head_ctx = []
        for h in range(head_num):
            lo = h * head_dim
            pr = (b * head_num + h) * N
            head_ctx.append(jnp.dot(p[pr:pr + N, :], vb[:, lo:lo + head_dim],
                                    preferred_element_type=f32))       # (N, hd)
        ctx_parts.append(jnp.concatenate(head_ctx, axis=-1))            # (N, D)
    ctx = jnp.concatenate(ctx_parts, axis=0)                            # (Bb*N, D)
    msa = jnp.dot(ctx.astype(jnp.bfloat16), wo_ref[...],
                  preferred_element_type=f32) + bo

    # ---- FFN + LayerNorms (batched over the whole block) ----
    h1 = _ln(msa + x, g1, b1)
    ff = _gelu(jnp.dot(h1.astype(jnp.bfloat16), w1_ref[...],
                       preferred_element_type=f32) + bf1)
    ff2 = jnp.dot(ff.astype(jnp.bfloat16), w2_ref[...],
                  preferred_element_type=f32) + bf2
    out = _ln(h1 + ff2, g2, b2)

    if apply_final_ln:  # GC_T.final_ln fused into the last encoder call
        out = _ln(out, fing_ref[...], finb_ref[...])
    o_ref[...] = out


def pallas_encoder(x_flat, pad_bias, mcl_mat, lp, *, head_num, n_nodes, final_ln=None):
    """x_flat: (B*N, D) f32; pad_bias: (B, N, N) bf16; mcl_mat: (B, I, N, N) bf16."""
    BN, D = x_flat.shape
    N = n_nodes
    B = BN // N
    I = mcl_mat.shape[1]
    head_dim = D // head_num
    bb = _pick_graphs_per_block(B, N)

    apply_final = final_ln is not None
    fin_g, fin_b = final_ln if apply_final else (lp['ln2_g'], lp['ln2_b'])

    def rep(shape):
        n = len(shape)
        return pl.BlockSpec(shape, lambda *_: (0,) * n)

    in_specs = [
        pl.BlockSpec((bb * N, D), lambda g: (g, 0)),
        pl.BlockSpec((bb, N, N), lambda g: (g, 0, 0)),
        pl.BlockSpec((bb, I, N, N), lambda g: (g, 0, 0, 0)),
        pl.BlockSpec(memory_space=pltpu.MemorySpace.SMEM),        # w_mcl (H, I) scalars
        rep((D, D)), rep((D, 2 * D)), rep((D, D)), rep((1, D)),
        rep((1, D)), rep((1, D)),
        rep((D, 2 * D)), rep((1, 2 * D)), rep((2 * D, D)), rep((1, D)),
        rep((1, D)), rep((1, D)),
        rep((1, D)), rep((1, D)),
    ]

    kernel = functools.partial(_encoder_kernel, head_num=head_num, head_dim=head_dim,
                               infla_dim=I, n_graphs=bb, n_nodes=N,
                               apply_final_ln=apply_final)
    return pl.pallas_call(
        kernel,
        out_shape=jax.ShapeDtypeStruct((BN, D), jnp.float32),
        grid=(B // bb,),
        in_specs=in_specs,
        out_specs=pl.BlockSpec((bb * N, D), lambda g: (g, 0)),
        compiler_params=pltpu.CompilerParams(
            dimension_semantics=("parallel",),
            vmem_limit_bytes=32 * 1024 * 1024),
    )(x_flat, pad_bias, mcl_mat,
      lp['w_mcl'], lp['wq_t'], lp['wkv_t'], lp['wo_t'], lp['bo'],
      lp['ln1_g'], lp['ln1_b'], lp['w1_t'], lp['b1'], lp['w2_t'], lp['b2'],
      lp['ln2_g'], lp['ln2_b'],
      jnp.asarray(fin_g, jnp.float32).reshape(1, D),
      jnp.asarray(fin_b, jnp.float32).reshape(1, D))


# ----------------------------------------------------------------------------
# Parameter init (deterministic, mirrors shapes of the PyTorch module).
# Weights are stored pre-transposed / fused / bf16-cast ONCE for the kernels.
# ----------------------------------------------------------------------------
def init_params(key, *, D, H, n_layers, class_num, edge_dim=7, infla_dim=1):
    std_lin = 0.02 * (n_layers ** -0.5)   # GC_T._init_layer_params for nn.Linear
    std_emb = 0.02                        # nn.Embedding init
    head_dim = D // H
    scale = head_dim ** (-0.5)
    keys = iter(jax.random.split(key, 64 + 32 * n_layers))
    bf16 = jnp.bfloat16

    def lin_w(shape):
        return std_lin * jax.random.normal(next(keys), shape, jnp.float32)

    def emb_w(shape):
        return std_emb * jax.random.normal(next(keys), shape, jnp.float32)

    params = {
        'node_encoder': emb_w((2, D)),
        'final_ln_g': jnp.ones((D,), jnp.float32),
        'final_ln_b': jnp.zeros((D,), jnp.float32),
        'pred_w_t': lin_w((class_num, D)).T.astype(bf16),       # (D, class_num)
        'pred_b': jnp.zeros((1, class_num), jnp.float32),
        'layers': [],
    }
    for _ in range(n_layers):
        wk_t = lin_w((D, D)).T
        wv_t = lin_w((D, D)).T
        lp = {
            # GCNConv
            'gcn_w_t': lin_w((D, D)).T.astype(bf16),            # (D, D) pre-transposed, bf16
            'gcn_edge_w_t': lin_w((D, edge_dim)).T.astype(bf16),  # (7, D)
            'gcn_root_emb': emb_w((2, D)),
            'gcn_ln_g': jnp.ones((D,), jnp.float32),
            'gcn_ln_b': jnp.zeros((D,), jnp.float32),
            # Encoder
            'w_mcl': lin_w((H, infla_dim)),                     # f32 (SMEM scalars)
            'wq_t': (lin_w((D, D)).T * scale).astype(bf16),     # softmax scale folded in
            'wkv_t': jnp.concatenate([wk_t, wv_t], axis=1).astype(bf16),  # (D, 2D) fused K/V
            'wo_t': lin_w((D, D)).T.astype(bf16),               # (D, D)
            'bo': jnp.zeros((1, D), jnp.float32),
            'ln1_g': jnp.ones((1, D), jnp.float32), 'ln1_b': jnp.zeros((1, D), jnp.float32),
            'w1_t': lin_w((2 * D, D)).T.astype(bf16),           # (D, 2D)
            'b1': jnp.zeros((1, 2 * D), jnp.float32),
            'w2_t': lin_w((D, 2 * D)).T.astype(bf16),           # (2D, D)
            'b2': jnp.zeros((1, D), jnp.float32),
            'ln2_g': jnp.ones((1, D), jnp.float32), 'ln2_b': jnp.zeros((1, D), jnp.float32),
        }
        params['layers'].append(lp)
    return params


# ----------------------------------------------------------------------------
# Full NET forward (eval mode)
# ----------------------------------------------------------------------------
def get_mcl(adj_f, inflation, num=6):
    mcl = adj_f / (jnp.sum(adj_f, axis=-1, keepdims=True) + 1e-6)
    result = mcl
    for i in range(num):
        result = mcl @ result
        if (i + 1) % 3 == 0:
            result = result ** inflation
        result = result / (jnp.sum(result, axis=-1, keepdims=True) + 1e-6)
    return result


def net_forward(params, node_idx, edge_index, edge_attr, batch, n_per_graph,
                *, B, N, D, H, n_layers, infla):
    row, col = edge_index[0], edge_index[1]

    # node_encoder embedding lookup (TODO(synk): embedding gather stays in XLA)
    x = params['node_encoder'][node_idx]                        # (B*N, D)

    # ---- GC_T preprocessing (layer-independent): adjacency, pad bias, MCL matrices ----
    eb = row // N
    src = row % N
    tgt = col % N
    adj = jnp.zeros((B, N, N), jnp.float32).at[eb, src, tgt].set(1.0)
    valid_node = (jnp.arange(N)[None, :] < n_per_graph[:, None]).astype(jnp.float32)
    adj = jnp.maximum(adj, valid_node[:, :, None] * jnp.eye(N, dtype=jnp.float32)[None])
    valid_pair = valid_node[:, :, None] * valid_node[:, None, :]
    pad_bias = ((1.0 - valid_pair) * (-1024.0)).astype(jnp.bfloat16)           # (B, N, N)
    mcl_mat = jnp.stack([get_mcl(adj, inf) for inf in infla],
                        axis=1).astype(jnp.bfloat16)                           # (B, I, N, N)

    # GCN normalization (same for all layers)
    deg = jnp.zeros((B * N,), jnp.float32).at[row].add(1.0) + 1.0
    inv_deg = (1.0 / deg).reshape(B * N, 1)
    deg_inv_sqrt = deg ** -0.5
    norm = deg_inv_sqrt[row] * deg_inv_sqrt[col]

    output = x                                                  # (B*N, D) flat residual stream

    for layer in range(n_layers):
        lp = params['layers'][layer]
        xf = output                                             # also the residual

        # ---- GCNConv ----
        x_lin = pallas_linear(xf, lp['gcn_w_t'])                # (B*N, D) bf16 MXU, f32 acc
        edge_emb = jnp.dot(edge_attr.astype(jnp.bfloat16), lp['gcn_edge_w_t'],
                           preferred_element_type=jnp.float32)  # (E, D)  K=7 -> plain XLA
        msg = norm[:, None] * jax.nn.relu(x_lin[row] + edge_emb)
        # TODO(synk): PyG propagate (data-dependent scatter-add) stays in XLA, not Pallas.
        aggr = jnp.zeros((B * N, D), jnp.float32).at[col].add(msg)
        root = lp['gcn_root_emb'][node_idx]                     # (B*N, D)

        # fused self-term + aggregate + LayerNorm + ReLU + residual
        gcn_out = pallas_gcn_post(aggr, x_lin, root, inv_deg, xf,
                                  lp['gcn_ln_g'], lp['gcn_ln_b'])

        # ---- Transformer Encoder (final LayerNorm fused into the last layer) ----
        final_ln = ((params['final_ln_g'], params['final_ln_b'])
                    if layer == n_layers - 1 else None)
        output = pallas_encoder(gcn_out, pad_bias, mcl_mat, lp,
                                head_num=H, n_nodes=N, final_ln=final_ln)

    if n_layers == 0:
        output = pallas_layernorm(output, params['final_ln_g'], params['final_ln_b'])

    # global_mean_pool over real nodes
    # TODO(synk): segment mean pooling (data-dependent) stays in XLA, not Pallas.
    mask = (node_idx > 0).astype(jnp.float32)
    sums = jnp.zeros((B, D), jnp.float32).at[batch].add(output * mask[:, None])
    cnts = jnp.maximum(jnp.zeros((B,), jnp.float32).at[batch].add(mask), 1.0)
    h_graph = sums / cnts[:, None]

    # graph_pred_linear (Pallas)
    return pallas_linear(h_graph, params['pred_w_t'], params['pred_b'])


# ----------------------------------------------------------------------------
if __name__ == "__main__":
    B, N, D, H = 2, 16, 128, 8          # batch, max_num_nodes, feature_dim, head_num
    n_layers, class_num, edge_dim = 2, 37, 7
    infla = [6.0]

    key = jax.random.PRNGKey(0)
    k_param, k_edge = jax.random.split(key)
    params = init_params(k_param, D=D, H=H, n_layers=n_layers,
                         class_num=class_num, edge_dim=edge_dim, infla_dim=len(infla))

    # synthetic batch_data: two graphs with 10 and 12 real nodes, padded to N=16
    n_per_graph = np.array([10, 12], dtype=np.int32)
    node_idx = np.zeros((B * N,), dtype=np.int32)     # batch_data.x : 1=real node, 0=pad
    for b in range(B):
        node_idx[b * N: b * N + n_per_graph[b]] = 1
    batch = np.repeat(np.arange(B, dtype=np.int32), N)

    # ring edges (both directions) among the real nodes of each graph (global node ids)
    src_l, dst_l = [], []
    for b in range(B):
        nb = int(n_per_graph[b])
        for i in range(nb):
            j = (i + 1) % nb
            src_l += [b * N + i, b * N + j]
            dst_l += [b * N + j, b * N + i]
    edge_index = jnp.array([src_l, dst_l], dtype=jnp.int32)
    E = edge_index.shape[1]
    edge_attr = jax.random.normal(k_edge, (E, edge_dim), jnp.float32)

    out = net_forward(params,
                      jnp.asarray(node_idx), edge_index, edge_attr,
                      jnp.asarray(batch), jnp.asarray(n_per_graph),
                      B=B, N=N, D=D, H=H, n_layers=n_layers, infla=infla)
    out = jax.block_until_ready(out)
    assert out.shape == (B, class_num) and out.dtype == jnp.float32
    print("KERNEL_OK")
</pallas_src>

<mosaic_0001>
module attributes {stable_mosaic.version = 11 : i64} {
  func.func @_linear_nobias_kernel(%arg0: i32, %arg1: memref<32x128xf32, #tpu.memory_space<vmem>>, %arg2: memref<128x128xbf16, #tpu.memory_space<vmem>>, %arg3: memref<32x128xf32, #tpu.memory_space<vmem>>) attributes {dimension_semantics = [#tpu.dimension_semantics<parallel>], iteration_bounds = array<i64: 1>, scalar_prefetch = 0 : i64, scratch_operands = 0 : i64, tpu.core_type = #tpu.core_type<tc>, window_params = [{transform_indices = @transform_0, window_bounds = array<i64: 32, 128>}, {pipeline_mode = #tpu.pipeline_mode<synchronous>, transform_indices = @transform_1, window_bounds = array<i64: 128, 128>}, {transform_indices = @transform_2, window_bounds = array<i64: 32, 128>}]} {
    %c0 = arith.constant 0 : index
    %c0_0 = arith.constant 0 : index
    %0 = vector.load %arg2[%c0, %c0_0] : memref<128x128xbf16, #tpu.memory_space<vmem>>, vector<128x128xbf16>
    %c0_1 = arith.constant 0 : index
    %c0_2 = arith.constant 0 : index
    %1 = vector.load %arg1[%c0_1, %c0_2] : memref<32x128xf32, #tpu.memory_space<vmem>>, vector<32x128xf32>
    %2 = arith.truncf %1 : vector<32x128xf32> to vector<32x128xbf16>
    %cst = arith.constant dense<0.000000e+00> : vector<32x128xf32>
    %3 = tpu.matmul %2, %0, %cst {dimension_numbers = #tpu.dot_dimension_numbers<[1], [0], [0], [1], [0, 0, 1, 1], [], []>} : vector<32x128xbf16>, vector<128x128xbf16>, vector<32x128xf32> -> vector<32x128xf32>
    %c0_3 = arith.constant 0 : index
    %c0_4 = arith.constant 0 : index
    %4 = vector.load %arg3[%c0_3, %c0_4] : memref<32x128xf32, #tpu.memory_space<vmem>>, vector<32x128xf32>
    tpu.vector_store %arg3[%c0_3, %c0_4], %3 {strides = array<i32>} : memref<32x128xf32, #tpu.memory_space<vmem>>, vector<32x128xf32>,
    return
  }
  func.func @transform_0(%arg0: i32) -> (i32, i32) {
    %c0_i32 = arith.constant 0 : i32
    %c0_i32_0 = arith.constant 0 : i32
    return %arg0, %c0_i32 : i32, i32
  }
  func.func @transform_1(%arg0: i32) -> (i32, i32) {
    %c0_i32 = arith.constant 0 : i32
    %c0_i32_0 = arith.constant 0 : i32
    %c0_i32_1 = arith.constant 0 : i32
    return %c0_i32, %c0_i32_0 : i32, i32
  }
  func.func @transform_2(%arg0: i32) -> (i32, i32) {
    %c0_i32 = arith.constant 0 : i32
    %c0_i32_0 = arith.constant 0 : i32
    return %arg0, %c0_i32 : i32, i32
  }
}

</mosaic_0001>

<llo_original>
// kernel: tpu_custom_call.1
$region0: #{tpu_custom_call.1}
  #allocation0 [shape = 'u32[]', space=smem, size = 0x4, offset = 0x4, fixed_abs, tag = 'smem constant byte address 0x4 - core index']
  #allocation1 [shape = 'u32[72,128]{1,0:T(1,128)}', space=vmem, size = 0x9000, scoped, tag = 'internal scratch']
  %s0 = inlined_call_operand.hbm [shape: f32[32,128], index: 0, kind: input, shape index: {}]
  %s1 = inlined_call_operand.hbm [shape: bf16[128,128], index: 1, kind: input, shape index: {}]
  %s2 = inlined_call_operand.hbm [shape: f32[32,128], index: 2, kind: output, shape index: {}]
  %s3 = sld [smem:[#allocation0]]
  $region26: #{tpu_custom_call.1} parent=0
    _
  %s5 = ssub.s32 1, %s3
  %s6 = scalar_select 0, %s5, %s3
  $region1: #{tpu_custom_call.1} parent=0
    #allocation2 [shape = 'u8[16384]{0}', space=vmem, size = 0x4000, scoped, tag = 'input window, operand 0, single buffered']
    #allocation3 [shape = 's32[1]{0}', space=sflag, size = 0x4, scoped, tag = 'scoped memory for tpu_custom_call.1']
    #allocation4 [shape = 's32[1]{0}', space=sflag, size = 0x4, scoped, tag = 'scoped memory for tpu_custom_call.1']
    #allocation5 [shape = 'u8[32768]{0}', space=vmem, size = 0x8000, scoped, tag = 'input window, operand 1, single buffered']
    #allocation6 [shape = 's32[1]{0}', space=sflag, size = 0x4, scoped, tag = 'scoped memory for tpu_custom_call.1']
    #allocation7 [shape = 'u8[16384]{0}', space=vmem, size = 0x4000, scoped, tag = 'output window, operand 0, single buffered']
    %7 = vsyncpa [#allocation3], 0
    %8 = vsyncpa [#allocation6], 0
    %9 = vsyncpa [#allocation4], 0
    // Predicated region
    $region2: #{tpu_custom_call.1} parent=1 // pred_check
      _
    $region3: #{tpu_custom_call.1} parent=1 // pred_check_branch
      %11 = sbr.rel (0) target = $region5
    $region4: #{tpu_custom_call.1} parent=1 // pred_region
      %13 = vsyncadd [#allocation3], 0
      %s14 = sshll.u32 %s0, 4
      %s15 = int_to_ptr.hbm [resolvable:$true] %s14
      %s16 = sshll.u32 [#allocation2], 4
      %s17 = int_to_ptr.vmem [resolvable:$true] %s16
      %22 = dma.hbm_to_vmem [thread:$0]  %s15, 512, %s17, [#allocation3], 128, 128, 8
    $region5: #{tpu_custom_call.1} parent=1 // pred_fallthru
      _
    // Predicated region
    $region6: #{tpu_custom_call.1} parent=1 // pred_check
      _
    $region7: #{tpu_custom_call.1} parent=1 // pred_check_branch
      %24 = sbr.rel (0) target = $region9
    $region8: #{tpu_custom_call.1} parent=1 // pred_region
      %26 = vsyncadd [#allocation6], 0
      %s27 = sshll.u32 %s1, 4
      %s28 = int_to_ptr.hbm [resolvable:$true] %s27
      %s29 = sshll.u32 [#allocation5], 4
      %s30 = int_to_ptr.vmem [resolvable:$true] %s29
      %35 = dma.hbm_to_vmem [thread:$0]  %s28, 1024, %s30, [#allocation6], 64, 64, 4
    $region9: #{tpu_custom_call.1} parent=1 // pred_fallthru
      _
    // Predicated region
    $region10: #{tpu_custom_call.1} parent=1 // pred_check
      _
    $region11: #{tpu_custom_call.1} parent=1 // pred_check_branch
      %37 = sbr.rel (0) target = $region13
    $region12: #{tpu_custom_call.1} parent=1 // pred_region
      %39 = dma.done [#allocation3], 512
    $region13: #{tpu_custom_call.1} parent=1 // pred_fallthru
      _
    // Predicated region
    $region14: #{tpu_custom_call.1} parent=1 // pred_check
      _
    $region15: #{tpu_custom_call.1} parent=1 // pred_check_branch
      %41 = sbr.rel (0) target = $region17
    $region16: #{tpu_custom_call.1} parent=1 // pred_region
      %43 = dma.done [#allocation6], 1024
    $region17: #{tpu_custom_call.1} parent=1 // pred_fallthru
      _
    %v44 = vld [vmem:[#allocation5] sm:$0xf]
    %v45 = vld [vmem:[#allocation5 + $0x4] sm:$0xf]
    %v46 = vld [vmem:[#allocation5 + $0x8] sm:$0xf]
    %v47 = vld [vmem:[#allocation5 + $0xc] sm:$0xf]
    %v48 = vld [vmem:[#allocation5 + $0x10] sm:$0xf]
    %v49 = vld [vmem:[#allocation5 + $0x14] sm:$0xf]
    %v50 = vld [vmem:[#allocation5 + $0x18] sm:$0xf]
    %v51 = vld [vmem:[#allocation5 + $0x1c] sm:$0xf]
    %v52 = vld [vmem:[#allocation5 + $0x20] sm:$0xf]
    %v53 = vld [vmem:[#allocation5 + $0x24] sm:$0xf]
    %v54 = vld [vmem:[#allocation5 + $0x28] sm:$0xf]
    %v55 = vld [vmem:[#allocation5 + $0x2c] sm:$0xf]
    %v56 = vld [vmem:[#allocation5 + $0x30] sm:$0xf]
    %v57 = vld [vmem:[#allocation5 + $0x34] sm:$0xf]
    %v58 = vld [vmem:[#allocation5 + $0x38] sm:$0xf]
    %v59 = vld [vmem:[#allocation5 + $0x3c] sm:$0xf]
    %v60 = vld [vmem:[#allocation2] sm:$0xff]
    %v61 = vld [vmem:[#allocation2 + $0x8] sm:$0xff]
    %v62 = vld [vmem:[#allocation2 + $0x10] sm:$0xff]
    %v63 = vld [vmem:[#allocation2 + $0x18] sm:$0xff]
    %v64 = vpack.c.bf16 %v61, %v60
    %v65 = vpack.c.bf16 %v63, %v62
    %v82 = vunpack.c.l.b16 %v44
    %v83 = vunpack.c.l.b16 %v45
    %v84 = vunpack.c.l.b16 %v46
    %v85 = vunpack.c.l.b16 %v47
    %v86 = vunpack.c.l.b16 %v48
    %v87 = vunpack.c.l.b16 %v49
    %v88 = vunpack.c.l.b16 %v50
    %v89 = vunpack.c.l.b16 %v51
    %v90 = vunpack.c.l.b16 %v52
    %v91 = vunpack.c.l.b16 %v53
    %v92 = vunpack.c.l.b16 %v54
    %v93 = vunpack.c.l.b16 %v55
    %v94 = vunpack.c.l.b16 %v56
    %v95 = vunpack.c.l.b16 %v57
    %v96 = vunpack.c.l.b16 %v58
    %v97 = vunpack.c.l.b16 %v59
    %v98 = vpack.c.b16 %v83, %v82
    %v99 = vpack.c.b16 %v85, %v84
    %v100 = vpack.c.b16 %v87, %v86
    %v101 = vpack.c.b16 %v89, %v88
    %v102 = vpack.c.b16 %v91, %v90
    %v103 = vpack.c.b16 %v93, %v92
    %v104 = vpack.c.b16 %v95, %v94
    %v105 = vpack.c.b16 %v97, %v96
    %114 = vmatpush.bf16.msra.mxu0 %v105
    %115 = vmatpush.bf16.msra.mxu0 %v104
    %116 = vmatpush.bf16.msra.mxu0 %v103
    %117 = vmatpush.bf16.msra.mxu0 %v102
    %118 = vmatpush.bf16.msra.mxu0 %v101
    %119 = vmatpush.bf16.msra.mxu0 %v100
    %120 = vmatpush.bf16.msra.mxu0 %v99
    %121 = vmatpush.bf16.msra.mxu0 %v98
    %122 = vmatmul.bf16.gmra.mxu0 %v64
    %v123 = vpop.f32.mrf.mxu0
    %v124 = vadd.f32 0.0, %v123
    %v125 = vpop.f32.mrf.mxu0
    %v126 = vadd.f32 0.0, %v125
    %127 = vmatmul.bf16.gmra.mxu0 %v65
    %v128 = vpop.f32.mrf.mxu0
    %v129 = vadd.f32 0.0, %v128
    %v130 = vpop.f32.mrf.mxu0
    %v131 = vadd.f32 0.0, %v130
    %132 = vdwg.mxu0
    %133 = vst [vmem:[#allocation7] sm:$0xff] %v124
    %134 = vst [vmem:[#allocation7 + $0x8] sm:$0xff] %v126
    %135 = vst [vmem:[#allocation7 + $0x10] sm:$0xff] %v129
    %136 = vst [vmem:[#allocation7 + $0x18] sm:$0xff] %v131
    // Predicated region
    $region18: #{tpu_custom_call.1} parent=1 // pred_check
      _
    $region19: #{tpu_custom_call.1} parent=1 // pred_check_branch
      %138 = sbr.rel (0) target = $region21
    $region20: #{tpu_custom_call.1} parent=1 // pred_region
      %140 = vsyncadd [#allocation4], 0
      %s141 = sshll.u32 [#allocation7], 4
      %s142 = int_to_ptr.vmem [resolvable:$true] %s141
      %s143 = sshll.u32 %s2, 4
      %s144 = int_to_ptr.hbm [resolvable:$true] %s143
      %149 = dma.vmem_to_hbm [thread:$0]  %s142, 512, %s144, [#allocation4], 128, 128, 8
    $region21: #{tpu_custom_call.1} parent=1 // pred_fallthru
      _
    // Predicated region
    $region22: #{tpu_custom_call.1} parent=1 // pred_check
      _
    $region23: #{tpu_custom_call.1} parent=1 // pred_check_branch
      %151 = sbr.rel (0) target = $region25
    $region24: #{tpu_custom_call.1} parent=1 // pred_region
      %153 = dma.done [#allocation4], 512
    $region25: #{tpu_custom_call.1} parent=1 // pred_fallthru
      _
    %154 = vsyncpa [#allocation3], 1
    %155 = vsyncpa [#allocation6], 1
    %156 = vsyncpa [#allocation4], 1

</llo_original>
